<compile_context>
chip_gen: v7x
topology: tpu7x:2x2x1
jax: 0.10.0
libtpu: 0.0.40
codegen_flags: <defaults>
</compile_context>

<pallas_src>
import functools

import jax
import jax.numpy as jnp
from jax.experimental import pallas as pl
from jax.experimental.pallas import tpu as pltpu

S_DEFAULT = 64.0
M_DEFAULT = 0.35
EPS = 1e-12  # F.normalize default eps


def _cosface_kernel(x_ref, w_ref, invx_ref, invw_ref, lab_ref, out_ref, *, s, m):
    # x_ref    : (TB, C_in)   activation tile (f32 or bf16)
    # w_ref    : (TN, C_in)   class-center tile (f32 or bf16)
    # invx_ref : (TB, 1)  f32 1 / max(||x_row||, eps)
    # invw_ref : (1, TN)  f32 1 / max(||w_row||, eps)
    # lab_ref  : (TB, 1)  int32 labels
    # out_ref  : (TB, TN) f32 logits
    j = pl.program_id(1)
    tn = out_ref.shape[1]

    # MXU matmul, contract over C_in, f32 accumulate.
    acc = jax.lax.dot_general(
        x_ref[...], w_ref[...],
        dimension_numbers=(((1,), (1,)), ((), ())),
        preferred_element_type=jnp.float32)                 # (TB, TN)

    # Row/column post-scaling replaces in-kernel normalization.
    cosine = acc * invx_ref[...] * invw_ref[...]

    # Globally-offset column ids so the one-hot compare is correct in every
    # column tile, not just j == 0.
    col = jax.lax.broadcasted_iota(jnp.int32, cosine.shape, 1) + j * tn
    is_target = col == lab_ref[...]

    out_ref[...] = (cosine
                    - jnp.where(is_target, jnp.float32(m), jnp.float32(0.0))) * s


def _round_up(a, b):
    return (a + b - 1) // b * b


def _pad_to(a, shape):
    pads = [(0, t - c) for c, t in zip(a.shape, shape)]
    if all(p == (0, 0) for p in pads):
        return a
    return jnp.pad(a, pads)


def cosface_forward(x, weight, labels, *, s=S_DEFAULT, m=M_DEFAULT,
                    block_b=128, block_n=256, matmul_dtype=None):
    """x: [B, C_in], weight: [C_out, C_in], labels: [B] int -> [B, C_out] f32.

    matmul_dtype: optionally cast x/W to bf16 for the MXU (v6e/v7x); the
    inverse norms and the accumulation stay in float32.
    """
    B, C_in = x.shape
    C_out, _ = weight.shape

    # Inverse L2 norms (tiny [B,1] / [1,C_out] arrays, trivial XLA fusion).
    xf = x.astype(jnp.float32)
    wf = weight.astype(jnp.float32)
    inv_x = 1.0 / jnp.maximum(jnp.sqrt(jnp.sum(xf * xf, axis=1, keepdims=True)), EPS)
    inv_w = (1.0 / jnp.maximum(jnp.sqrt(jnp.sum(wf * wf, axis=1, keepdims=True)),
                               EPS)).reshape(1, C_out)

    # Tile sizes: TB multiple of 8, TN multiple of 128 (lane-dense stores),
    # shrunk to the (rounded-up) problem size for small shapes.
    TB = min(block_b, _round_up(B, 8))
    TN = min(block_n, _round_up(C_out, 128))
    Bp = _round_up(B, TB)
    Cp = _round_up(C_out, TN)

    mm_dtype = jnp.dtype(matmul_dtype) if matmul_dtype is not None else jnp.dtype(x.dtype)
    x_p = _pad_to(x.astype(mm_dtype), (Bp, C_in))
    w_p = _pad_to(weight.astype(mm_dtype), (Cp, C_in))
    invx_p = _pad_to(inv_x, (Bp, 1))
    invw_p = _pad_to(inv_w, (1, Cp))
    lab_p = _pad_to(labels.reshape(B, 1).astype(jnp.int32), (Bp, 1))

    grid = (Bp // TB, Cp // TN)

    itemsize = mm_dtype.itemsize
    cost = pl.CostEstimate(
        flops=2 * Bp * Cp * C_in,
        transcendentals=0,
        bytes_accessed=(Bp * C_in * itemsize            # x streamed once
                        + grid[0] * Cp * C_in * itemsize  # W streamed per batch tile
                        + Bp * Cp * 4))                 # f32 logits written

    out = pl.pallas_call(
        functools.partial(_cosface_kernel, s=float(s), m=float(m)),
        out_shape=jax.ShapeDtypeStruct((Bp, Cp), jnp.float32),
        grid=grid,
        in_specs=[
            pl.BlockSpec((TB, C_in), lambda i, j: (i, 0)),   # x tile
            pl.BlockSpec((TN, C_in), lambda i, j: (j, 0)),   # W tile
            pl.BlockSpec((TB, 1), lambda i, j: (i, 0)),      # inv row norms
            pl.BlockSpec((1, TN), lambda i, j: (0, j)),      # inv col norms
            pl.BlockSpec((TB, 1), lambda i, j: (i, 0)),      # labels
        ],
        out_specs=pl.BlockSpec((TB, TN), lambda i, j: (i, j)),
        compiler_params=pltpu.CompilerParams(
            dimension_semantics=("parallel", "parallel")),
        cost_estimate=cost,
    )(x_p, w_p, invx_p, invw_p, lab_p)

    return out[:B, :C_out]


def xavier_uniform(key, out_ch, in_ch, dtype=jnp.float32):
    # nn.init.xavier_uniform_ for a [out, in] weight: U(-a, a), a = sqrt(6/(in+out))
    bound = (6.0 / (in_ch + out_ch)) ** 0.5
    return jax.random.uniform(key, (out_ch, in_ch), dtype=dtype,
                              minval=-bound, maxval=bound)


def _reference(x, weight, labels, s=S_DEFAULT, m=M_DEFAULT):
    x_n = x / jnp.maximum(jnp.linalg.norm(x, axis=1, keepdims=True), EPS)
    w_n = weight / jnp.maximum(jnp.linalg.norm(weight, axis=1, keepdims=True), EPS)
    cos = x_n @ w_n.T
    oh = jax.nn.one_hot(labels, weight.shape[0], dtype=jnp.float32)
    return (oh * (cos - m) + (1.0 - oh) * cos) * s


if __name__ == "__main__":
    key = jax.random.PRNGKey(0)

    # A tiny case and a case that spans multiple (TB, TN) tiles (exercises the
    # grid, padding, and the globally-offset one-hot compare).
    for (B, C_IN, C_OUT) in [(8, 32, 16), (16, 64, 384)]:
        kx, kw, kl, key = jax.random.split(key, 4)
        x = jax.random.normal(kx, (B, C_IN), dtype=jnp.float32)
        weight = xavier_uniform(kw, C_OUT, C_IN)
        labels = jax.random.randint(kl, (B,), 0, C_OUT, dtype=jnp.int32)

        ref = _reference(x, weight, labels)

        # f32 path
        out = cosface_forward(x, weight, labels)
        jax.block_until_ready(out)
        assert out.shape == ref.shape
        assert jnp.allclose(out, ref, atol=2e-3, rtol=1e-4), \
            float(jnp.max(jnp.abs(out - ref)))

        # bf16-fed MXU path (v6e/v7x); s=64 amplifies bf16 cosine error, so use
        # a loss-level tolerance.
        out_bf16 = cosface_forward(x, weight, labels, matmul_dtype=jnp.bfloat16)
        jax.block_until_ready(out_bf16)
        assert float(jnp.max(jnp.abs(out_bf16 - ref))) < 2.0

    print("KERNEL_OK")
</pallas_src>

<mosaic_0001>
module attributes {stable_mosaic.version = 11 : i64} {
  func.func @_cosface_kernel(%arg0: i32, %arg1: i32, %arg2: memref<8x32xf32, #tpu.memory_space<vmem>>, %arg3: memref<128x32xf32, #tpu.memory_space<vmem>>, %arg4: memref<8x1xf32, #tpu.memory_space<vmem>>, %arg5: memref<1x128xf32, #tpu.memory_space<vmem>>, %arg6: memref<8x1xi32, #tpu.memory_space<vmem>>, %arg7: memref<8x128xf32, #tpu.memory_space<vmem>>) attributes {dimension_semantics = [#tpu.dimension_semantics<parallel>, #tpu.dimension_semantics<parallel>], iteration_bounds = array<i64: 1, 1>, scalar_prefetch = 0 : i64, scratch_operands = 0 : i64, tpu.core_type = #tpu.core_type<tc>, window_params = [{transform_indices = @transform_0, window_bounds = array<i64: 8, 32>}, {transform_indices = @transform_1, window_bounds = array<i64: 128, 32>}, {transform_indices = @transform_2, window_bounds = array<i64: 8, 1>}, {transform_indices = @transform_3, window_bounds = array<i64: 1, 128>}, {transform_indices = @transform_4, window_bounds = array<i64: 8, 1>}, {transform_indices = @transform_5, window_bounds = array<i64: 8, 128>}]} {
    %c0 = arith.constant 0 : index
    %c0_0 = arith.constant 0 : index
    %0 = vector.load %arg2[%c0, %c0_0] : memref<8x32xf32, #tpu.memory_space<vmem>>, vector<8x32xf32>
    %c0_1 = arith.constant 0 : index
    %c0_2 = arith.constant 0 : index
    %1 = vector.load %arg3[%c0_1, %c0_2] : memref<128x32xf32, #tpu.memory_space<vmem>>, vector<128x32xf32>
    %cst = arith.constant dense<0.000000e+00> : vector<8x128xf32>
    %2 = tpu.matmul %0, %1, %cst {dimension_numbers = #tpu.dot_dimension_numbers<[1], [1], [0], [0], [0, 0, 1, 0], [], []>} : vector<8x32xf32>, vector<128x32xf32>, vector<8x128xf32> -> vector<8x128xf32>
    %c0_3 = arith.constant 0 : index
    %c0_4 = arith.constant 0 : index
    %3 = vector.load %arg4[%c0_3, %c0_4] : memref<8x1xf32, #tpu.memory_space<vmem>>, vector<8x1xf32>
    %4 = vector.broadcast %3 : vector<8x1xf32> to vector<8x128xf32>
    %5 = arith.mulf %2, %4 : vector<8x128xf32>
    %c0_5 = arith.constant 0 : index
    %c0_6 = arith.constant 0 : index
    %6 = vector.load %arg5[%c0_5, %c0_6] : memref<1x128xf32, #tpu.memory_space<vmem>>, vector<1x128xf32>
    %7 = vector.broadcast %6 : vector<1x128xf32> to vector<8x128xf32>
    %8 = arith.mulf %5, %7 : vector<8x128xf32>
    %9 = tpu.iota {dimensions = array<i32: 1>} : vector<8x128xi32>
    %c128_i32 = arith.constant 128 : i32
    %10 = arith.muli %arg1, %c128_i32 : i32
    %11 = vector.broadcast %10 : i32 to vector<8x128xi32>
    %12 = arith.addi %9, %11 : vector<8x128xi32>
    %c0_7 = arith.constant 0 : index
    %c0_8 = arith.constant 0 : index
    %13 = vector.load %arg6[%c0_7, %c0_8] : memref<8x1xi32, #tpu.memory_space<vmem>>, vector<8x1xi32>
    %14 = vector.broadcast %13 : vector<8x1xi32> to vector<8x128xi32>
    %15 = arith.cmpi eq, %12, %14 : vector<8x128xi32>
    %cst_9 = arith.constant 3.500000e-01 : f32
    %cst_10 = arith.constant 0.000000e+00 : f32
    %16 = vector.broadcast %cst_9 : f32 to vector<8x128xf32>
    %17 = vector.broadcast %cst_10 : f32 to vector<8x128xf32>
    %18 = arith.select %15, %16, %17 : vector<8x128xi1>, vector<8x128xf32>
    %19 = arith.subf %8, %18 : vector<8x128xf32>
    %cst_11 = arith.constant 6.400000e+01 : f32
    %20 = vector.broadcast %cst_11 : f32 to vector<8x128xf32>
    %21 = arith.mulf %19, %20 : vector<8x128xf32>
    %c0_12 = arith.constant 0 : index
    %c0_13 = arith.constant 0 : index
    %22 = vector.load %arg7[%c0_12, %c0_13] : memref<8x128xf32, #tpu.memory_space<vmem>>, vector<8x128xf32>
    tpu.vector_store %arg7[%c0_12, %c0_13], %21 {strides = array<i32>} : memref<8x128xf32, #tpu.memory_space<vmem>>, vector<8x128xf32>,
    return
  }
  func.func @transform_0(%arg0: i32, %arg1: i32) -> (i32, i32) {
    %c0_i32 = arith.constant 0 : i32
    %c0_i32_0 = arith.constant 0 : i32
    return %arg0, %c0_i32 : i32, i32
  }
  func.func @transform_1(%arg0: i32, %arg1: i32) -> (i32, i32) {
    %c0_i32 = arith.constant 0 : i32
    %c0_i32_0 = arith.constant 0 : i32
    return %arg1, %c0_i32 : i32, i32
  }
  func.func @transform_2(%arg0: i32, %arg1: i32) -> (i32, i32) {
    %c0_i32 = arith.constant 0 : i32
    %c0_i32_0 = arith.constant 0 : i32
    return %arg0, %c0_i32 : i32, i32
  }
  func.func @transform_3(%arg0: i32, %arg1: i32) -> (i32, i32) {
    %c0_i32 = arith.constant 0 : i32
    %c0_i32_0 = arith.constant 0 : i32
    return %c0_i32, %arg1 : i32, i32
  }
  func.func @transform_4(%arg0: i32, %arg1: i32) -> (i32, i32) {
    %c0_i32 = arith.constant 0 : i32
    %c0_i32_0 = arith.constant 0 : i32
    return %arg0, %c0_i32 : i32, i32
  }
  func.func @transform_5(%arg0: i32, %arg1: i32) -> (i32, i32) {
    %c0_i32 = arith.constant 0 : i32
    return %arg0, %arg1 : i32, i32
  }
}

</mosaic_0001>

<llo_original>
// kernel: tpu_custom_call.1
$region0: #{tpu_custom_call.1}
  #allocation0 [shape = 'u32[]', space=smem, size = 0x4, offset = 0x4, fixed_abs, tag = 'smem constant byte address 0x4 - core index']
  #allocation1 [shape = 'u32[144,128]{1,0:T(1,128)}', space=vmem, size = 0x12000, scoped, tag = 'internal scratch']
  %s0 = inlined_call_operand.vmem [shape: f32[8,32], index: 0, kind: input, shape index: {}]
  %s1 = inlined_call_operand.vmem [shape: f32[128,32], index: 1, kind: input, shape index: {}]
  %s2 = inlined_call_operand.vmem [shape: f32[8,1], index: 2, kind: input, shape index: {}]
  %s3 = inlined_call_operand.vmem [shape: f32[1,128], index: 3, kind: input, shape index: {}]
  %s4 = inlined_call_operand.vmem [shape: s32[8,1], index: 4, kind: input, shape index: {}]
  %s5 = inlined_call_operand.hbm [shape: f32[8,128], index: 5, kind: output, shape index: {}]
  %s6 = sld [smem:[#allocation0]]
  $region30: #{tpu_custom_call.1} parent=0
    _
  %s8 = ssub.s32 1, %s6
  %s9 = scalar_select 0, %s8, %s6
  $region1: #{tpu_custom_call.1} parent=0
    #allocation2 [shape = 'u8[4096]{0}', space=vmem, size = 0x1000, scoped, tag = 'output window, operand 0, single buffered']
    #allocation3 [shape = 's32[1]{0}', space=sflag, size = 0x4, scoped, tag = 'scoped memory for tpu_custom_call.1']
    %10 = vsyncpa [#allocation3], 0
    // Predicated region
    $region2: #{tpu_custom_call.1} parent=1 // pred_check
      _
    $region3: #{tpu_custom_call.1} parent=1 // pred_check_branch
      %12 = sbr.rel (0) target = $region5
    $region4: #{tpu_custom_call.1} parent=1 // pred_region
      _
    $region5: #{tpu_custom_call.1} parent=1 // pred_fallthru
      _
    // Predicated region
    $region6: #{tpu_custom_call.1} parent=1 // pred_check
      _
    $region7: #{tpu_custom_call.1} parent=1 // pred_check_branch
      %14 = sbr.rel (0) target = $region9
    $region8: #{tpu_custom_call.1} parent=1 // pred_region
      _
    $region9: #{tpu_custom_call.1} parent=1 // pred_fallthru
      _
    // Predicated region
    $region10: #{tpu_custom_call.1} parent=1 // pred_check
      _
    $region11: #{tpu_custom_call.1} parent=1 // pred_check_branch
      %16 = sbr.rel (0) target = $region13
    $region12: #{tpu_custom_call.1} parent=1 // pred_region
      _
    $region13: #{tpu_custom_call.1} parent=1 // pred_fallthru
      _
    // Predicated region
    $region14: #{tpu_custom_call.1} parent=1 // pred_check
      _
    $region15: #{tpu_custom_call.1} parent=1 // pred_check_branch
      %18 = sbr.rel (0) target = $region17
    $region16: #{tpu_custom_call.1} parent=1 // pred_region
      _
    $region17: #{tpu_custom_call.1} parent=1 // pred_fallthru
      _
    // Predicated region
    $region18: #{tpu_custom_call.1} parent=1 // pred_check
      _
    $region19: #{tpu_custom_call.1} parent=1 // pred_check_branch
      %20 = sbr.rel (0) target = $region21
    $region20: #{tpu_custom_call.1} parent=1 // pred_region
      _
    $region21: #{tpu_custom_call.1} parent=1 // pred_fallthru
      _
    %v21 = vld [vmem:[%s0] sm:$0xff]
    %v22 = vld [vmem:[%s1] sm:$0xff]
    %v23 = vld [vmem:[%s1 + $0x8] sm:$0xff]
    %v24 = vld [vmem:[%s1 + $0x10] sm:$0xff]
    %v25 = vld [vmem:[%s1 + $0x18] sm:$0xff]
    %v26 = vld [vmem:[%s1 + $0x20] sm:$0xff]
    %v27 = vld [vmem:[%s1 + $0x28] sm:$0xff]
    %v28 = vld [vmem:[%s1 + $0x30] sm:$0xff]
    %v29 = vld [vmem:[%s1 + $0x38] sm:$0xff]
    %v30 = vld [vmem:[%s1 + $0x40] sm:$0xff]
    %v31 = vld [vmem:[%s1 + $0x48] sm:$0xff]
    %v32 = vld [vmem:[%s1 + $0x50] sm:$0xff]
    %v33 = vld [vmem:[%s1 + $0x58] sm:$0xff]
    %v34 = vld [vmem:[%s1 + $0x60] sm:$0xff]
    %v35 = vld [vmem:[%s1 + $0x68] sm:$0xff]
    %v36 = vld [vmem:[%s1 + $0x70] sm:$0xff]
    %v37 = vld [vmem:[%s1 + $0x78] sm:$0xff]
    %vm38 = vcmask 261120
    %v40 = vsel %vm38, %v21, 0
    %v43 = vsel %vm38, %v22, 0
    %v46 = vsel %vm38, %v23, 0
    %v49 = vsel %vm38, %v24, 0
    %v52 = vsel %vm38, %v25, 0
    %v55 = vsel %vm38, %v26, 0
    %v58 = vsel %vm38, %v27, 0
    %v61 = vsel %vm38, %v28, 0
    %v64 = vsel %vm38, %v29, 0
    %v67 = vsel %vm38, %v30, 0
    %v70 = vsel %vm38, %v31, 0
    %v73 = vsel %vm38, %v32, 0
    %v76 = vsel %vm38, %v33, 0
    %v79 = vsel %vm38, %v34, 0
    %v82 = vsel %vm38, %v35, 0
    %v85 = vsel %vm38, %v36, 0
    %v88 = vsel %vm38, %v37, 0
    %90 = vmatprep.subr.mxu0 0.0
    %91 = vmatpush1.xpose.msra.mxu0 %v43
    %92 = vmatprep.subr.mxu0 0.0
    %93 = vmatpush1.xpose.msra.mxu0 %v46
    %94 = vmatprep.subr.mxu0 0.0
    %95 = vmatpush1.xpose.msra.mxu0 %v49
    %96 = vmatprep.subr.mxu0 0.0
    %97 = vmatpush1.xpose.msra.mxu0 %v52
    %98 = vmatprep.subr.mxu0 0.0
    %99 = vmatpush1.xpose.msra.mxu0 %v55
    %100 = vmatprep.subr.mxu0 0.0
    %101 = vmatpush1.xpose.msra.mxu0 %v58
    %102 = vmatprep.subr.mxu0 0.0
    %103 = vmatpush1.xpose.msra.mxu0 %v61
    %104 = vmatprep.subr.mxu0 0.0
    %105 = vmatpush1.xpose.msra.mxu0 %v64
    %106 = vmatprep.subr.mxu0 0.0
    %107 = vmatpush1.xpose.msra.mxu0 %v67
    %108 = vmatprep.subr.mxu0 0.0
    %109 = vmatpush1.xpose.msra.mxu0 %v70
    %110 = vmatprep.subr.mxu0 0.0
    %111 = vmatpush1.xpose.msra.mxu0 %v73
    %112 = vmatprep.subr.mxu0 0.0
    %113 = vmatpush1.xpose.msra.mxu0 %v76
    %114 = vmatprep.subr.mxu0 0.0
    %115 = vmatpush1.xpose.msra.mxu0 %v79
    %116 = vmatprep.subr.mxu0 0.0
    %117 = vmatpush1.xpose.msra.mxu0 %v82
    %118 = vmatprep.subr.mxu0 0.0
    %119 = vmatpush1.xpose.msra.mxu0 %v85
    %120 = vmatprep.subr.mxu0 0.0
    %121 = vmatpush1.xpose.msra.mxu0 %v88
    %122 = vmatprep.subr.mxu0 0.0
    %123 = vmatpush1.xpose.msra.mxu0 0.0
    %124 = vmatprep.subr.mxu0 0.0
    %125 = vmatpush1.xpose.msra.mxu0 0.0
    %126 = vmatprep.subr.mxu0 0.0
    %127 = vmatpush1.xpose.msra.mxu0 0.0
    %128 = vmatprep.subr.mxu0 0.0
    %129 = vmatpush1.xpose.msra.mxu0 0.0
    %130 = vmatprep.subr.mxu0 0.0
    %131 = vmatpush1.xpose.msra.mxu0 0.0
    %132 = vmatprep.subr.mxu0 0.0
    %133 = vmatpush1.xpose.msra.mxu0 0.0
    %134 = vmatprep.subr.mxu0 0.0
    %135 = vmatpush1.xpose.msra.mxu0 0.0
    %136 = vmatprep.subr.mxu0 0.0
    %137 = vmatpush1.xpose.msra.mxu0 0.0
    %138 = vmatprep.subr.mxu0 0.0
    %139 = vmatpush1.xpose.msra.mxu0 0.0
    %140 = vmatprep.subr.mxu0 0.0
    %141 = vmatpush1.xpose.msra.mxu0 0.0
    %142 = vmatprep.subr.mxu0 0.0
    %143 = vmatpush1.xpose.msra.mxu0 0.0
    %144 = vmatprep.subr.mxu0 0.0
    %145 = vmatpush1.xpose.msra.mxu0 0.0
    %146 = vmatprep.subr.mxu0 0.0
    %147 = vmatpush1.xpose.msra.mxu0 0.0
    %148 = vmatprep.subr.mxu0 0.0
    %149 = vmatpush1.xpose.msra.mxu0 0.0
    %150 = vmatprep.subr.mxu0 0.0
    %151 = vmatpush1.xpose.msra.mxu0 0.0
    %152 = vmatprep.subr.mxu0 0.0
    %153 = vmatpush1.xpose.msra.mxu0 0.0
    %154 = vmatprep.mubr.f32.mxu0 0.0
    %155 = vmatmul.mubr.f32.gmra.mrb[0].mxu0 %v40
    %v156 = vpop.f32.mrb[0].mxu0
    %v157 = vadd.f32 0.0, %v156
    %v158 = vpop.f32.mrb[0].mxu0
    %159 = vdwg.mxu0
    %v160 = vld [vmem:[%s2] sm:$0xff]
    %162 = vset.pattern.permute.xlu0 0
    %163 = vperm.xlu0 %162, %v160
    %v164 = vpop.permute.xlu0 %163
    %v166 = vmul.f32 %v157, %v164
    %v167 = vld [vmem:[%s3] sm:$0x1]
    %v169 = vlaneseq
    %v170 = vshrl.u32 %v169, 7
    %v171 = vsub.s32 0, %v170
    %v172 = vrot.slane %v167, %v171
    %v174 = vmul.f32 %v166, %v172
    %v175 = vlaneseq
    %v176 = vand.u32 %v175, 127
    %s177 = smul.u32 0, 128
    %v178 = vstv %s177
    %v179 = vadd.s32 %v176, %v178
    %v180 = vld [vmem:[%s4] sm:$0xff]
    %181 = vset.pattern.permute.xlu0 0
    %182 = vperm.xlu0 %181, %v180
    %v183 = vpop.permute.xlu0 %182
    %vm184 = vcmp.eq.s32.totalorder %v179, %v183
    %v185 = vsel %vm184, 0.35, 0.0
    %v186 = vsub.f32 %v174, %v185
    %v187 = vmul.f32 %v186, 64.0
    %188 = vst [vmem:[#allocation2] sm:$0xff] %v187
    // Predicated region
    $region22: #{tpu_custom_call.1} parent=1 // pred_check
      _
    $region23: #{tpu_custom_call.1} parent=1 // pred_check_branch
      %190 = sbr.rel (0) target = $region25
    $region24: #{tpu_custom_call.1} parent=1 // pred_region
      %s192 = ssub.s32 128, 128
      %193 = vsyncadd [#allocation3], %s192
      %s195 = sshll.u32 [#allocation2], 4
      %s196 = int_to_ptr.vmem [resolvable:$true] %s195
      %198 = dma.vmem_to_hbm [thread:$0]  %s196, 128, %s5, [#allocation3]
    $region25: #{tpu_custom_call.1} parent=1 // pred_fallthru
      _
    // Predicated region
    $region26: #{tpu_custom_call.1} parent=1 // pred_check
      _
    $region27: #{tpu_custom_call.1} parent=1 // pred_check_branch
      %200 = sbr.rel (0) target = $region29
    $region28: #{tpu_custom_call.1} parent=1 // pred_region
      %201 = dma.done [#allocation3], 128
    $region29: #{tpu_custom_call.1} parent=1 // pred_fallthru
      _
    %202 = vsyncpa [#allocation3], 1

</llo_original>
